<compile_context>
chip_gen: v5e
topology: v5e:2x2
jax: 0.10.0
libtpu: 0.0.40
codegen_flags: <defaults>
</compile_context>

<pallas_src>
import functools

import jax
import jax.numpy as jnp
import numpy as np
from jax import lax
from jax.experimental import pallas as pl
from jax.experimental.pallas import tpu as pltpu


# ---------------------------------------------------------------------------
# Offline weight composition: conv2(conv1(x)) == conv_eff(x)  (both are
# cross-correlations, stride 1, no padding, no nonlinearity in between).
# ---------------------------------------------------------------------------
def compose_conv_weights(w1_oihw, b1, w2_oihw, b2):
    """w1: (M, C, k1, k1), w2: (O, M, k2, k2) -> w_eff: (O, C, k1+k2-1, ...), b_eff: (O,)."""
    m, c, k1h, k1w = w1_oihw.shape
    o, m2, k2h, k2w = w2_oihw.shape
    assert m == m2
    keh, kew = k1h + k2h - 1, k1w + k2w - 1
    w_eff = jnp.zeros((o, c, keh, kew), jnp.float32)
    for di in range(k2h):
        for dj in range(k2w):
            contrib = jnp.einsum("om,mcij->ocij", w2_oihw[:, :, di, dj], w1_oihw)
            w_eff = w_eff.at[:, :, di:di + k1h, dj:dj + k1w].add(contrib)
    b_eff = b2 + jnp.einsum("omij,m->o", w2_oihw, b1)
    return w_eff, b_eff


def build_params(w1_oihw, b1, w2_oihw, b2):
    w_eff, b_eff = compose_conv_weights(w1_oihw, b1, w2_oihw, b2)
    assert w_eff.shape[0] == 1, "fused kernel assumes a single output channel"
    return {
        "w_flat": w_eff.reshape(-1),        # (Cin*KH*KW,) in [c, i, j] order
        "b_eff": b_eff,                     # (1,)
        "cin": int(w_eff.shape[1]),
        "kh": int(w_eff.shape[2]),
        "kw": int(w_eff.shape[3]),
    }


# ---------------------------------------------------------------------------
# Fused conv kernel: one grid step per batch element, NCHW in / NCHW out.
# ---------------------------------------------------------------------------
def _fused_conv_kernel(w_ref, b_ref, x_ref, o_ref, *, cin, kh, kw, oh, ow, w_in):
    """w_ref: (cin*kh*kw,) f32 SMEM, index [(c*kh + i)*kw + j]
    b_ref: (1,) f32 SMEM
    x_ref: (1, cin, H, W) f32 VMEM   (one image)
    o_ref: (1, 1, oh, ow) f32 VMEM
    """
    # Per-kernel-column accumulators of shape (oh, W): all FMAs are done on
    # lane-aligned row strips; the column (lane) shift happens only 'kw' times
    # at the very end.
    col_acc = [jnp.zeros((oh, w_in), jnp.float32) for _ in range(kw)]
    for c in range(cin):
        xc = x_ref[0, c]                           # (H, W) load, 2 vregs
        for i in range(kh):
            row = xc[i:i + oh, :]                  # (oh, W) sublane-offset, lane aligned
            for j in range(kw):
                wv = w_ref[(c * kh + i) * kw + j]  # scalar from SMEM
                col_acc[j] = col_acc[j] + wv * row

    acc = jnp.full((oh, ow), b_ref[0], dtype=jnp.float32)   # bias folded into init
    for j in range(kw):
        acc = acc + col_acc[j][:, j:j + ow]
    o_ref[0, 0] = acc.astype(o_ref.dtype)


def fused_conv2d_nchw(x_nchw, w_flat, b_eff, *, kh, kw):
    """x: (N, Cin, H, W) f32 -> (N, 1, H-kh+1, W-kw+1) f32 via one Pallas call."""
    n, cin, h, w = x_nchw.shape
    oh, ow = h - kh + 1, w - kw + 1
    kernel = functools.partial(
        _fused_conv_kernel, cin=cin, kh=kh, kw=kw, oh=oh, ow=ow, w_in=w
    )
    return pl.pallas_call(
        kernel,
        out_shape=jax.ShapeDtypeStruct((n, 1, oh, ow), x_nchw.dtype),
        grid_spec=pltpu.PrefetchScalarGridSpec(
            num_scalar_prefetch=0,
            grid=(n,),
            in_specs=[
                pl.BlockSpec(memory_space=pltpu.MemorySpace.SMEM),   # weights (75,)
                pl.BlockSpec(memory_space=pltpu.MemorySpace.SMEM),   # bias (1,)
                pl.BlockSpec((1, cin, h, w), lambda i: (i, 0, 0, 0)),
            ],
            out_specs=pl.BlockSpec((1, 1, oh, ow), lambda i: (i, 0, 0, 0)),
        ),
        compiler_params=pltpu.CompilerParams(
            dimension_semantics=("parallel",),   # batch across TCs on v7x
        ),
    )(w_flat, b_eff, x_nchw)


def model_forward(x_nchw, params):
    """Equivalent of Model.forward: conv1 -> conv2, as one fused composed conv."""
    return fused_conv2d_nchw(
        x_nchw, params["w_flat"], params["b_eff"], kh=params["kh"], kw=params["kw"]
    )


# ---------------------------------------------------------------------------
# Pure-JAX reference (two separate convs, mirrors torch.nn.Conv2d exactly).
# ---------------------------------------------------------------------------
def _reference_forward(x_nchw, w1, b1, w2, b2):
    dn = ("NCHW", "OIHW", "NCHW")
    y = lax.conv_general_dilated(x_nchw, w1, (1, 1), "VALID", dimension_numbers=dn)
    y = y + b1.reshape(1, -1, 1, 1)
    z = lax.conv_general_dilated(y, w2, (1, 1), "VALID", dimension_numbers=dn)
    z = z + b2.reshape(1, -1, 1, 1)
    return z


if __name__ == "__main__":
    key = jax.random.PRNGKey(0)
    kx, k1, k2, k3, k4 = jax.random.split(key, 5)

    # batch=2, channels=3 (required by conv1), 16x16 spatial.
    x = jax.random.normal(kx, (2, 3, 16, 16), jnp.float32)

    # PyTorch-layout parameters (OIHW / (O,)) exactly as nn.Conv2d would hold.
    w1 = jax.random.normal(k1, (6, 3, 3, 3), jnp.float32) * 0.1
    b1 = jax.random.normal(k2, (6,), jnp.float32) * 0.1
    w2 = jax.random.normal(k3, (1, 6, 3, 3), jnp.float32) * 0.1
    b2 = jax.random.normal(k4, (1,), jnp.float32) * 0.1

    params = build_params(w1, b1, w2, b2)

    out = jax.block_until_ready(model_forward(x, params))
    assert out.shape == (2, 1, 12, 12), out.shape

    # Verify the fused/composed kernel against the two-conv reference (this
    # also checks the weight/bias composition, the only place that could
    # silently diverge).
    ref = jax.block_until_ready(_reference_forward(x, w1, b1, w2, b2))
    np.testing.assert_allclose(np.asarray(out), np.asarray(ref), rtol=1e-4, atol=1e-5)

    print("KERNEL_OK")
</pallas_src>

<mosaic_0001>
module attributes {stable_mosaic.version = 11 : i64} {
  func.func @_fused_conv_kernel(%arg0: i32, %arg1: memref<75xf32, #tpu.memory_space<smem>>, %arg2: memref<1xf32, #tpu.memory_space<smem>>, %arg3: memref<1x3x16x16xf32, #tpu.memory_space<vmem>>, %arg4: memref<1x1x12x12xf32, #tpu.memory_space<vmem>>) attributes {dimension_semantics = [#tpu.dimension_semantics<parallel>], iteration_bounds = array<i64: 2>, scalar_prefetch = 0 : i64, scratch_operands = 0 : i64, tpu.core_type = #tpu.core_type<tc>, window_params = [{transform_indices = @transform_0, window_bounds = array<i64: 75>}, {transform_indices = @transform_1, window_bounds = array<i64: 1>}, {transform_indices = @transform_2, window_bounds = array<i64: 1, 3, 16, 16>}, {transform_indices = @transform_3, window_bounds = array<i64: 1, 1, 12, 12>}]} {
    %cst = arith.constant 0.000000e+00 : f32
    %0 = vector.broadcast %cst : f32 to vector<12x16xf32>
    %cst_0 = arith.constant 0.000000e+00 : f32
    %1 = vector.broadcast %cst_0 : f32 to vector<12x16xf32>
    %cst_1 = arith.constant 0.000000e+00 : f32
    %2 = vector.broadcast %cst_1 : f32 to vector<12x16xf32>
    %cst_2 = arith.constant 0.000000e+00 : f32
    %3 = vector.broadcast %cst_2 : f32 to vector<12x16xf32>
    %cst_3 = arith.constant 0.000000e+00 : f32
    %4 = vector.broadcast %cst_3 : f32 to vector<12x16xf32>
    %c0 = arith.constant 0 : index
    %c0_4 = arith.constant 0 : index
    %c0_5 = arith.constant 0 : index
    %c0_6 = arith.constant 0 : index
    %5 = vector.load %arg3[%c0, %c0_4, %c0_5, %c0_6] : memref<1x3x16x16xf32, #tpu.memory_space<vmem>>, vector<1x1x16x16xf32>
    %6 = vector.shape_cast %5 : vector<1x1x16x16xf32> to vector<16x16xf32>
    %7 = vector.extract_strided_slice %6 {offsets = [0, 0], sizes = [12, 16], strides = [1, 1]} : vector<16x16xf32> to vector<12x16xf32>
    %c0_7 = arith.constant 0 : index
    %8 = memref.load %arg1[%c0_7] : memref<75xf32, #tpu.memory_space<smem>>
    %9 = vector.broadcast %8 : f32 to vector<12x16xf32>
    %10 = arith.mulf %9, %7 : vector<12x16xf32>
    %11 = arith.addf %0, %10 : vector<12x16xf32>
    %c1 = arith.constant 1 : index
    %12 = memref.load %arg1[%c1] : memref<75xf32, #tpu.memory_space<smem>>
    %13 = vector.broadcast %12 : f32 to vector<12x16xf32>
    %14 = arith.mulf %13, %7 : vector<12x16xf32>
    %15 = arith.addf %1, %14 : vector<12x16xf32>
    %c2 = arith.constant 2 : index
    %16 = memref.load %arg1[%c2] : memref<75xf32, #tpu.memory_space<smem>>
    %17 = vector.broadcast %16 : f32 to vector<12x16xf32>
    %18 = arith.mulf %17, %7 : vector<12x16xf32>
    %19 = arith.addf %2, %18 : vector<12x16xf32>
    %c3 = arith.constant 3 : index
    %20 = memref.load %arg1[%c3] : memref<75xf32, #tpu.memory_space<smem>>
    %21 = vector.broadcast %20 : f32 to vector<12x16xf32>
    %22 = arith.mulf %21, %7 : vector<12x16xf32>
    %23 = arith.addf %3, %22 : vector<12x16xf32>
    %c4 = arith.constant 4 : index
    %24 = memref.load %arg1[%c4] : memref<75xf32, #tpu.memory_space<smem>>
    %25 = vector.broadcast %24 : f32 to vector<12x16xf32>
    %26 = arith.mulf %25, %7 : vector<12x16xf32>
    %27 = arith.addf %4, %26 : vector<12x16xf32>
    %28 = vector.extract_strided_slice %6 {offsets = [1, 0], sizes = [12, 16], strides = [1, 1]} : vector<16x16xf32> to vector<12x16xf32>
    %c5 = arith.constant 5 : index
    %29 = memref.load %arg1[%c5] : memref<75xf32, #tpu.memory_space<smem>>
    %30 = vector.broadcast %29 : f32 to vector<12x16xf32>
    %31 = arith.mulf %30, %28 : vector<12x16xf32>
    %32 = arith.addf %11, %31 : vector<12x16xf32>
    %c6 = arith.constant 6 : index
    %33 = memref.load %arg1[%c6] : memref<75xf32, #tpu.memory_space<smem>>
    %34 = vector.broadcast %33 : f32 to vector<12x16xf32>
    %35 = arith.mulf %34, %28 : vector<12x16xf32>
    %36 = arith.addf %15, %35 : vector<12x16xf32>
    %c7 = arith.constant 7 : index
    %37 = memref.load %arg1[%c7] : memref<75xf32, #tpu.memory_space<smem>>
    %38 = vector.broadcast %37 : f32 to vector<12x16xf32>
    %39 = arith.mulf %38, %28 : vector<12x16xf32>
    %40 = arith.addf %19, %39 : vector<12x16xf32>
    %c8 = arith.constant 8 : index
    %41 = memref.load %arg1[%c8] : memref<75xf32, #tpu.memory_space<smem>>
    %42 = vector.broadcast %41 : f32 to vector<12x16xf32>
    %43 = arith.mulf %42, %28 : vector<12x16xf32>
    %44 = arith.addf %23, %43 : vector<12x16xf32>
    %c9 = arith.constant 9 : index
    %45 = memref.load %arg1[%c9] : memref<75xf32, #tpu.memory_space<smem>>
    %46 = vector.broadcast %45 : f32 to vector<12x16xf32>
    %47 = arith.mulf %46, %28 : vector<12x16xf32>
    %48 = arith.addf %27, %47 : vector<12x16xf32>
    %49 = vector.extract_strided_slice %6 {offsets = [2, 0], sizes = [12, 16], strides = [1, 1]} : vector<16x16xf32> to vector<12x16xf32>
    %c10 = arith.constant 10 : index
    %50 = memref.load %arg1[%c10] : memref<75xf32, #tpu.memory_space<smem>>
    %51 = vector.broadcast %50 : f32 to vector<12x16xf32>
    %52 = arith.mulf %51, %49 : vector<12x16xf32>
    %53 = arith.addf %32, %52 : vector<12x16xf32>
    %c11 = arith.constant 11 : index
    %54 = memref.load %arg1[%c11] : memref<75xf32, #tpu.memory_space<smem>>
    %55 = vector.broadcast %54 : f32 to vector<12x16xf32>
    %56 = arith.mulf %55, %49 : vector<12x16xf32>
    %57 = arith.addf %36, %56 : vector<12x16xf32>
    %c12 = arith.constant 12 : index
    %58 = memref.load %arg1[%c12] : memref<75xf32, #tpu.memory_space<smem>>
    %59 = vector.broadcast %58 : f32 to vector<12x16xf32>
    %60 = arith.mulf %59, %49 : vector<12x16xf32>
    %61 = arith.addf %40, %60 : vector<12x16xf32>
    %c13 = arith.constant 13 : index
    %62 = memref.load %arg1[%c13] : memref<75xf32, #tpu.memory_space<smem>>
    %63 = vector.broadcast %62 : f32 to vector<12x16xf32>
    %64 = arith.mulf %63, %49 : vector<12x16xf32>
    %65 = arith.addf %44, %64 : vector<12x16xf32>
    %c14 = arith.constant 14 : index
    %66 = memref.load %arg1[%c14] : memref<75xf32, #tpu.memory_space<smem>>
    %67 = vector.broadcast %66 : f32 to vector<12x16xf32>
    %68 = arith.mulf %67, %49 : vector<12x16xf32>
    %69 = arith.addf %48, %68 : vector<12x16xf32>
    %70 = vector.extract_strided_slice %6 {offsets = [3, 0], sizes = [12, 16], strides = [1, 1]} : vector<16x16xf32> to vector<12x16xf32>
    %c15 = arith.constant 15 : index
    %71 = memref.load %arg1[%c15] : memref<75xf32, #tpu.memory_space<smem>>
    %72 = vector.broadcast %71 : f32 to vector<12x16xf32>
    %73 = arith.mulf %72, %70 : vector<12x16xf32>
    %74 = arith.addf %53, %73 : vector<12x16xf32>
    %c16 = arith.constant 16 : index
    %75 = memref.load %arg1[%c16] : memref<75xf32, #tpu.memory_space<smem>>
    %76 = vector.broadcast %75 : f32 to vector<12x16xf32>
    %77 = arith.mulf %76, %70 : vector<12x16xf32>
    %78 = arith.addf %57, %77 : vector<12x16xf32>
    %c17 = arith.constant 17 : index
    %79 = memref.load %arg1[%c17] : memref<75xf32, #tpu.memory_space<smem>>
    %80 = vector.broadcast %79 : f32 to vector<12x16xf32>
    %81 = arith.mulf %80, %70 : vector<12x16xf32>
    %82 = arith.addf %61, %81 : vector<12x16xf32>
    %c18 = arith.constant 18 : index
    %83 = memref.load %arg1[%c18] : memref<75xf32, #tpu.memory_space<smem>>
    %84 = vector.broadcast %83 : f32 to vector<12x16xf32>
    %85 = arith.mulf %84, %70 : vector<12x16xf32>
    %86 = arith.addf %65, %85 : vector<12x16xf32>
    %c19 = arith.constant 19 : index
    %87 = memref.load %arg1[%c19] : memref<75xf32, #tpu.memory_space<smem>>
    %88 = vector.broadcast %87 : f32 to vector<12x16xf32>
    %89 = arith.mulf %88, %70 : vector<12x16xf32>
    %90 = arith.addf %69, %89 : vector<12x16xf32>
    %91 = vector.extract_strided_slice %6 {offsets = [4, 0], sizes = [12, 16], strides = [1, 1]} : vector<16x16xf32> to vector<12x16xf32>
    %c20 = arith.constant 20 : index
    %92 = memref.load %arg1[%c20] : memref<75xf32, #tpu.memory_space<smem>>
    %93 = vector.broadcast %92 : f32 to vector<12x16xf32>
    %94 = arith.mulf %93, %91 : vector<12x16xf32>
    %95 = arith.addf %74, %94 : vector<12x16xf32>
    %c21 = arith.constant 21 : index
    %96 = memref.load %arg1[%c21] : memref<75xf32, #tpu.memory_space<smem>>
    %97 = vector.broadcast %96 : f32 to vector<12x16xf32>
    %98 = arith.mulf %97, %91 : vector<12x16xf32>
    %99 = arith.addf %78, %98 : vector<12x16xf32>
    %c22 = arith.constant 22 : index
    %100 = memref.load %arg1[%c22] : memref<75xf32, #tpu.memory_space<smem>>
    %101 = vector.broadcast %100 : f32 to vector<12x16xf32>
    %102 = arith.mulf %101, %91 : vector<12x16xf32>
    %103 = arith.addf %82, %102 : vector<12x16xf32>
    %c23 = arith.constant 23 : index
    %104 = memref.load %arg1[%c23] : memref<75xf32, #tpu.memory_space<smem>>
    %105 = vector.broadcast %104 : f32 to vector<12x16xf32>
    %106 = arith.mulf %105, %91 : vector<12x16xf32>
    %107 = arith.addf %86, %106 : vector<12x16xf32>
    %c24 = arith.constant 24 : index
    %108 = memref.load %arg1[%c24] : memref<75xf32, #tpu.memory_space<smem>>
    %109 = vector.broadcast %108 : f32 to vector<12x16xf32>
    %110 = arith.mulf %109, %91 : vector<12x16xf32>
    %111 = arith.addf %90, %110 : vector<12x16xf32>
    %c0_8 = arith.constant 0 : index
    %c1_9 = arith.constant 1 : index
    %c0_10 = arith.constant 0 : index
    %c0_11 = arith.constant 0 : index
    %112 = vector.load %arg3[%c0_8, %c1_9, %c0_10, %c0_11] : memref<1x3x16x16xf32, #tpu.memory_space<vmem>>, vector<1x1x16x16xf32>
    %113 = vector.shape_cast %112 : vector<1x1x16x16xf32> to vector<16x16xf32>
    %114 = vector.extract_strided_slice %113 {offsets = [0, 0], sizes = [12, 16], strides = [1, 1]} : vector<16x16xf32> to vector<12x16xf32>
    %c25 = arith.constant 25 : index
    %115 = memref.load %arg1[%c25] : memref<75xf32, #tpu.memory_space<smem>>
    %116 = vector.broadcast %115 : f32 to vector<12x16xf32>
    %117 = arith.mulf %116, %114 : vector<12x16xf32>
    %118 = arith.addf %95, %117 : vector<12x16xf32>
    %c26 = arith.constant 26 : index
    %119 = memref.load %arg1[%c26] : memref<75xf32, #tpu.memory_space<smem>>
    %120 = vector.broadcast %119 : f32 to vector<12x16xf32>
    %121 = arith.mulf %120, %114 : vector<12x16xf32>
    %122 = arith.addf %99, %121 : vector<12x16xf32>
    %c27 = arith.constant 27 : index
    %123 = memref.load %arg1[%c27] : memref<75xf32, #tpu.memory_space<smem>>
    %124 = vector.broadcast %123 : f32 to vector<12x16xf32>
    %125 = arith.mulf %124, %114 : vector<12x16xf32>
    %126 = arith.addf %103, %125 : vector<12x16xf32>
    %c28 = arith.constant 28 : index
    %127 = memref.load %arg1[%c28] : memref<75xf32, #tpu.memory_space<smem>>
    %128 = vector.broadcast %127 : f32 to vector<12x16xf32>
    %129 = arith.mulf %128, %114 : vector<12x16xf32>
    %130 = arith.addf %107, %129 : vector<12x16xf32>
    %c29 = arith.constant 29 : index
    %131 = memref.load %arg1[%c29] : memref<75xf32, #tpu.memory_space<smem>>
    %132 = vector.broadcast %131 : f32 to vector<12x16xf32>
    %133 = arith.mulf %132, %114 : vector<12x16xf32>
    %134 = arith.addf %111, %133 : vector<12x16xf32>
    %135 = vector.extract_strided_slice %113 {offsets = [1, 0], sizes = [12, 16], strides = [1, 1]} : vector<16x16xf32> to vector<12x16xf32>
    %c30 = arith.constant 30 : index
    %136 = memref.load %arg1[%c30] : memref<75xf32, #tpu.memory_space<smem>>
    %137 = vector.broadcast %136 : f32 to vector<12x16xf32>
    %138 = arith.mulf %137, %135 : vector<12x16xf32>
    %139 = arith.addf %118, %138 : vector<12x16xf32>
    %c31 = arith.constant 31 : index
    %140 = memref.load %arg1[%c31] : memref<75xf32, #tpu.memory_space<smem>>
    %141 = vector.broadcast %140 : f32 to vector<12x16xf32>
    %142 = arith.mulf %141, %135 : vector<12x16xf32>
    %143 = arith.addf %122, %142 : vector<12x16xf32>
    %c32 = arith.constant 32 : index
    %144 = memref.load %arg1[%c32] : memref<75xf32, #tpu.memory_space<smem>>
    %145 = vector.broadcast %144 : f32 to vector<12x16xf32>
    %146 = arith.mulf %145, %135 : vector<12x16xf32>
    %147 = arith.addf %126, %146 : vector<12x16xf32>
    %c33 = arith.constant 33 : index
    %148 = memref.load %arg1[%c33] : memref<75xf32, #tpu.memory_space<smem>>
    %149 = vector.broadcast %148 : f32 to vector<12x16xf32>
    %150 = arith.mulf %149, %135 : vector<12x16xf32>
    %151 = arith.addf %130, %150 : vector<12x16xf32>
    %c34 = arith.constant 34 : index
    %152 = memref.load %arg1[%c34] : memref<75xf32, #tpu.memory_space<smem>>
    %153 = vector.broadcast %152 : f32 to vector<12x16xf32>
    %154 = arith.mulf %153, %135 : vector<12x16xf32>
    %155 = arith.addf %134, %154 : vector<12x16xf32>
    %156 = vector.extract_strided_slice %113 {offsets = [2, 0], sizes = [12, 16], strides = [1, 1]} : vector<16x16xf32> to vector<12x16xf32>
    %c35 = arith.constant 35 : index
    %157 = memref.load %arg1[%c35] : memref<75xf32, #tpu.memory_space<smem>>
    %158 = vector.broadcast %157 : f32 to vector<12x16xf32>
    %159 = arith.mulf %158, %156 : vector<12x16xf32>
    %160 = arith.addf %139, %159 : vector<12x16xf32>
    %c36 = arith.constant 36 : index
    %161 = memref.load %arg1[%c36] : memref<75xf32, #tpu.memory_space<smem>>
    %162 = vector.broadcast %161 : f32 to vector<12x16xf32>
    %163 = arith.mulf %162, %156 : vector<12x16xf32>
    %164 = arith.addf %143, %163 : vector<12x16xf32>
    %c37 = arith.constant 37 : index
    %165 = memref.load %arg1[%c37] : memref<75xf32, #tpu.memory_space<smem>>
    %166 = vector.broadcast %165 : f32 to vector<12x16xf32>
    %167 = arith.mulf %166, %156 : vector<12x16xf32>
    %168 = arith.addf %147, %167 : vector<12x16xf32>
    %c38 = arith.constant 38 : index
    %169 = memref.load %arg1[%c38] : memref<75xf32, #tpu.memory_space<smem>>
    %170 = vector.broadcast %169 : f32 to vector<12x16xf32>
    %171 = arith.mulf %170, %156 : vector<12x16xf32>
    %172 = arith.addf %151, %171 : vector<12x16xf32>
    %c39 = arith.constant 39 : index
    %173 = memref.load %arg1[%c39] : memref<75xf32, #tpu.memory_space<smem>>
    %174 = vector.broadcast %173 : f32 to vector<12x16xf32>
    %175 = arith.mulf %174, %156 : vector<12x16xf32>
    %176 = arith.addf %155, %175 : vector<12x16xf32>
    %177 = vector.extract_strided_slice %113 {offsets = [3, 0], sizes = [12, 16], strides = [1, 1]} : vector<16x16xf32> to vector<12x16xf32>
    %c40 = arith.constant 40 : index
    %178 = memref.load %arg1[%c40] : memref<75xf32, #tpu.memory_space<smem>>
    %179 = vector.broadcast %178 : f32 to vector<12x16xf32>
    %180 = arith.mulf %179, %177 : vector<12x16xf32>
    %181 = arith.addf %160, %180 : vector<12x16xf32>
    %c41 = arith.constant 41 : index
    %182 = memref.load %arg1[%c41] : memref<75xf32, #tpu.memory_space<smem>>
    %183 = vector.broadcast %182 : f32 to vector<12x16xf32>
    %184 = arith.mulf %183, %177 : vector<12x16xf32>
    %185 = arith.addf %164, %184 : vector<12x16xf32>
    %c42 = arith.constant 42 : index
    %186 = memref.load %arg1[%c42] : memref<75xf32, #tpu.memory_space<smem>>
    %187 = vector.broadcast %186 : f32 to vector<12x16xf32>
    %188 = arith.mulf %187, %177 : vector<12x16xf32>
    %189 = arith.addf %168, %188 : vector<12x16xf32>
    %c43 = arith.constant 43 : index
    %190 = memref.load %arg1[%c43] : memref<75xf32, #tpu.memory_space<smem>>
    %191 = vector.broadcast %190 : f32 to vector<12x16xf32>
    %192 = arith.mulf %191, %177 : vector<12x16xf32>
    %193 = arith.addf %172, %192 : vector<12x16xf32>
    %c44 = arith.constant 44 : index
    %194 = memref.load %arg1[%c44] : memref<75xf32, #tpu.memory_space<smem>>
    %195 = vector.broadcast %194 : f32 to vector<12x16xf32>
    %196 = arith.mulf %195, %177 : vector<12x16xf32>
    %197 = arith.addf %176, %196 : vector<12x16xf32>
    %198 = vector.extract_strided_slice %113 {offsets = [4, 0], sizes = [12, 16], strides = [1, 1]} : vector<16x16xf32> to vector<12x16xf32>
    %c45 = arith.constant 45 : index
    %199 = memref.load %arg1[%c45] : memref<75xf32, #tpu.memory_space<smem>>
    %200 = vector.broadcast %199 : f32 to vector<12x16xf32>
    %201 = arith.mulf %200, %198 : vector<12x16xf32>
    %202 = arith.addf %181, %201 : vector<12x16xf32>
    %c46 = arith.constant 46 : index
    %203 = memref.load %arg1[%c46] : memref<75xf32, #tpu.memory_space<smem>>
    %204 = vector.broadcast %203 : f32 to vector<12x16xf32>
    %205 = arith.mulf %204, %198 : vector<12x16xf32>
    %206 = arith.addf %185, %205 : vector<12x16xf32>
    %c47 = arith.constant 47 : index
    %207 = memref.load %arg1[%c47] : memref<75xf32, #tpu.memory_space<smem>>
    %208 = vector.broadcast %207 : f32 to vector<12x16xf32>
    %209 = arith.mulf %208, %198 : vector<12x16xf32>
    %210 = arith.addf %189, %209 : vector<12x16xf32>
    %c48 = arith.constant 48 : index
    %211 = memref.load %arg1[%c48] : memref<75xf32, #tpu.memory_space<smem>>
    %212 = vector.broadcast %211 : f32 to vector<12x16xf32>
    %213 = arith.mulf %212, %198 : vector<12x16xf32>
    %214 = arith.addf %193, %213 : vector<12x16xf32>
    %c49 = arith.constant 49 : index
    %215 = memref.load %arg1[%c49] : memref<75xf32, #tpu.memory_space<smem>>
    %216 = vector.broadcast %215 : f32 to vector<12x16xf32>
    %217 = arith.mulf %216, %198 : vector<12x16xf32>
    %218 = arith.addf %197, %217 : vector<12x16xf32>
    %c0_12 = arith.constant 0 : index
    %c2_13 = arith.constant 2 : index
    %c0_14 = arith.constant 0 : index
    %c0_15 = arith.constant 0 : index
    %219 = vector.load %arg3[%c0_12, %c2_13, %c0_14, %c0_15] : memref<1x3x16x16xf32, #tpu.memory_space<vmem>>, vector<1x1x16x16xf32>
    %220 = vector.shape_cast %219 : vector<1x1x16x16xf32> to vector<16x16xf32>
    %221 = vector.extract_strided_slice %220 {offsets = [0, 0], sizes = [12, 16], strides = [1, 1]} : vector<16x16xf32> to vector<12x16xf32>
    %c50 = arith.constant 50 : index
    %222 = memref.load %arg1[%c50] : memref<75xf32, #tpu.memory_space<smem>>
    %223 = vector.broadcast %222 : f32 to vector<12x16xf32>
    %224 = arith.mulf %223, %221 : vector<12x16xf32>
    %225 = arith.addf %202, %224 : vector<12x16xf32>
    %c51 = arith.constant 51 : index
    %226 = memref.load %arg1[%c51] : memref<75xf32, #tpu.memory_space<smem>>
    %227 = vector.broadcast %226 : f32 to vector<12x16xf32>
    %228 = arith.mulf %227, %221 : vector<12x16xf32>
    %229 = arith.addf %206, %228 : vector<12x16xf32>
    %c52 = arith.constant 52 : index
    %230 = memref.load %arg1[%c52] : memref<75xf32, #tpu.memory_space<smem>>
    %231 = vector.broadcast %230 : f32 to vector<12x16xf32>
    %232 = arith.mulf %231, %221 : vector<12x16xf32>
    %233 = arith.addf %210, %232 : vector<12x16xf32>
    %c53 = arith.constant 53 : index
    %234 = memref.load %arg1[%c53] : memref<75xf32, #tpu.memory_space<smem>>
    %235 = vector.broadcast %234 : f32 to vector<12x16xf32>
    %236 = arith.mulf %235, %221 : vector<12x16xf32>
    %237 = arith.addf %214, %236 : vector<12x16xf32>
    %c54 = arith.constant 54 : index
    %238 = memref.load %arg1[%c54] : memref<75xf32, #tpu.memory_space<smem>>
    %239 = vector.broadcast %238 : f32 to vector<12x16xf32>
    %240 = arith.mulf %239, %221 : vector<12x16xf32>
    %241 = arith.addf %218, %240 : vector<12x16xf32>
    %242 = vector.extract_strided_slice %220 {offsets = [1, 0], sizes = [12, 16], strides = [1, 1]} : vector<16x16xf32> to vector<12x16xf32>
    %c55 = arith.constant 55 : index
    %243 = memref.load %arg1[%c55] : memref<75xf32, #tpu.memory_space<smem>>
    %244 = vector.broadcast %243 : f32 to vector<12x16xf32>
    %245 = arith.mulf %244, %242 : vector<12x16xf32>
    %246 = arith.addf %225, %245 : vector<12x16xf32>
    %c56 = arith.constant 56 : index
    %247 = memref.load %arg1[%c56] : memref<75xf32, #tpu.memory_space<smem>>
    %248 = vector.broadcast %247 : f32 to vector<12x16xf32>
    %249 = arith.mulf %248, %242 : vector<12x16xf32>
    %250 = arith.addf %229, %249 : vector<12x16xf32>
    %c57 = arith.constant 57 : index
    %251 = memref.load %arg1[%c57] : memref<75xf32, #tpu.memory_space<smem>>
    %252 = vector.broadcast %251 : f32 to vector<12x16xf32>
    %253 = arith.mulf %252, %242 : vector<12x16xf32>
    %254 = arith.addf %233, %253 : vector<12x16xf32>
    %c58 = arith.constant 58 : index
    %255 = memref.load %arg1[%c58] : memref<75xf32, #tpu.memory_space<smem>>
    %256 = vector.broadcast %255 : f32 to vector<12x16xf32>
    %257 = arith.mulf %256, %242 : vector<12x16xf32>
    %258 = arith.addf %237, %257 : vector<12x16xf32>
    %c59 = arith.constant 59 : index
    %259 = memref.load %arg1[%c59] : memref<75xf32, #tpu.memory_space<smem>>
    %260 = vector.broadcast %259 : f32 to vector<12x16xf32>
    %261 = arith.mulf %260, %242 : vector<12x16xf32>
    %262 = arith.addf %241, %261 : vector<12x16xf32>
    %263 = vector.extract_strided_slice %220 {offsets = [2, 0], sizes = [12, 16], strides = [1, 1]} : vector<16x16xf32> to vector<12x16xf32>
    %c60 = arith.constant 60 : index
    %264 = memref.load %arg1[%c60] : memref<75xf32, #tpu.memory_space<smem>>
    %265 = vector.broadcast %264 : f32 to vector<12x16xf32>
    %266 = arith.mulf %265, %263 : vector<12x16xf32>
    %267 = arith.addf %246, %266 : vector<12x16xf32>
    %c61 = arith.constant 61 : index
    %268 = memref.load %arg1[%c61] : memref<75xf32, #tpu.memory_space<smem>>
    %269 = vector.broadcast %268 : f32 to vector<12x16xf32>
    %270 = arith.mulf %269, %263 : vector<12x16xf32>
    %271 = arith.addf %250, %270 : vector<12x16xf32>
    %c62 = arith.constant 62 : index
    %272 = memref.load %arg1[%c62] : memref<75xf32, #tpu.memory_space<smem>>
    %273 = vector.broadcast %272 : f32 to vector<12x16xf32>
    %274 = arith.mulf %273, %263 : vector<12x16xf32>
    %275 = arith.addf %254, %274 : vector<12x16xf32>
    %c63 = arith.constant 63 : index
    %276 = memref.load %arg1[%c63] : memref<75xf32, #tpu.memory_space<smem>>
    %277 = vector.broadcast %276 : f32 to vector<12x16xf32>
    %278 = arith.mulf %277, %263 : vector<12x16xf32>
    %279 = arith.addf %258, %278 : vector<12x16xf32>
    %c64 = arith.constant 64 : index
    %280 = memref.load %arg1[%c64] : memref<75xf32, #tpu.memory_space<smem>>
    %281 = vector.broadcast %280 : f32 to vector<12x16xf32>
    %282 = arith.mulf %281, %263 : vector<12x16xf32>
    %283 = arith.addf %262, %282 : vector<12x16xf32>
    %284 = vector.extract_strided_slice %220 {offsets = [3, 0], sizes = [12, 16], strides = [1, 1]} : vector<16x16xf32> to vector<12x16xf32>
    %c65 = arith.constant 65 : index
    %285 = memref.load %arg1[%c65] : memref<75xf32, #tpu.memory_space<smem>>
    %286 = vector.broadcast %285 : f32 to vector<12x16xf32>
    %287 = arith.mulf %286, %284 : vector<12x16xf32>
    %288 = arith.addf %267, %287 : vector<12x16xf32>
    %c66 = arith.constant 66 : index
    %289 = memref.load %arg1[%c66] : memref<75xf32, #tpu.memory_space<smem>>
    %290 = vector.broadcast %289 : f32 to vector<12x16xf32>
    %291 = arith.mulf %290, %284 : vector<12x16xf32>
    %292 = arith.addf %271, %291 : vector<12x16xf32>
    %c67 = arith.constant 67 : index
    %293 = memref.load %arg1[%c67] : memref<75xf32, #tpu.memory_space<smem>>
    %294 = vector.broadcast %293 : f32 to vector<12x16xf32>
    %295 = arith.mulf %294, %284 : vector<12x16xf32>
    %296 = arith.addf %275, %295 : vector<12x16xf32>
    %c68 = arith.constant 68 : index
    %297 = memref.load %arg1[%c68] : memref<75xf32, #tpu.memory_space<smem>>
    %298 = vector.broadcast %297 : f32 to vector<12x16xf32>
    %299 = arith.mulf %298, %284 : vector<12x16xf32>
    %300 = arith.addf %279, %299 : vector<12x16xf32>
    %c69 = arith.constant 69 : index
    %301 = memref.load %arg1[%c69] : memref<75xf32, #tpu.memory_space<smem>>
    %302 = vector.broadcast %301 : f32 to vector<12x16xf32>
    %303 = arith.mulf %302, %284 : vector<12x16xf32>
    %304 = arith.addf %283, %303 : vector<12x16xf32>
    %305 = vector.extract_strided_slice %220 {offsets = [4, 0], sizes = [12, 16], strides = [1, 1]} : vector<16x16xf32> to vector<12x16xf32>
    %c70 = arith.constant 70 : index
    %306 = memref.load %arg1[%c70] : memref<75xf32, #tpu.memory_space<smem>>
    %307 = vector.broadcast %306 : f32 to vector<12x16xf32>
    %308 = arith.mulf %307, %305 : vector<12x16xf32>
    %309 = arith.addf %288, %308 : vector<12x16xf32>
    %c71 = arith.constant 71 : index
    %310 = memref.load %arg1[%c71] : memref<75xf32, #tpu.memory_space<smem>>
    %311 = vector.broadcast %310 : f32 to vector<12x16xf32>
    %312 = arith.mulf %311, %305 : vector<12x16xf32>
    %313 = arith.addf %292, %312 : vector<12x16xf32>
    %c72 = arith.constant 72 : index
    %314 = memref.load %arg1[%c72] : memref<75xf32, #tpu.memory_space<smem>>
    %315 = vector.broadcast %314 : f32 to vector<12x16xf32>
    %316 = arith.mulf %315, %305 : vector<12x16xf32>
    %317 = arith.addf %296, %316 : vector<12x16xf32>
    %c73 = arith.constant 73 : index
    %318 = memref.load %arg1[%c73] : memref<75xf32, #tpu.memory_space<smem>>
    %319 = vector.broadcast %318 : f32 to vector<12x16xf32>
    %320 = arith.mulf %319, %305 : vector<12x16xf32>
    %321 = arith.addf %300, %320 : vector<12x16xf32>
    %c74 = arith.constant 74 : index
    %322 = memref.load %arg1[%c74] : memref<75xf32, #tpu.memory_space<smem>>
    %323 = vector.broadcast %322 : f32 to vector<12x16xf32>
    %324 = arith.mulf %323, %305 : vector<12x16xf32>
    %325 = arith.addf %304, %324 : vector<12x16xf32>
    %c0_16 = arith.constant 0 : index
    %326 = memref.load %arg2[%c0_16] : memref<1xf32, #tpu.memory_space<smem>>
    %327 = vector.broadcast %326 : f32 to vector<12x12xf32>
    %328 = vector.extract_strided_slice %309 {offsets = [0, 0], sizes = [12, 12], strides = [1, 1]} : vector<12x16xf32> to vector<12x12xf32>
    %329 = arith.addf %327, %328 : vector<12x12xf32>
    %330 = vector.extract_strided_slice %313 {offsets = [0, 1], sizes = [12, 12], strides = [1, 1]} : vector<12x16xf32> to vector<12x12xf32>
    %331 = arith.addf %329, %330 : vector<12x12xf32>
    %332 = vector.extract_strided_slice %317 {offsets = [0, 2], sizes = [12, 12], strides = [1, 1]} : vector<12x16xf32> to vector<12x12xf32>
    %333 = arith.addf %331, %332 : vector<12x12xf32>
    %334 = vector.extract_strided_slice %321 {offsets = [0, 3], sizes = [12, 12], strides = [1, 1]} : vector<12x16xf32> to vector<12x12xf32>
    %335 = arith.addf %333, %334 : vector<12x12xf32>
    %336 = vector.extract_strided_slice %325 {offsets = [0, 4], sizes = [12, 12], strides = [1, 1]} : vector<12x16xf32> to vector<12x12xf32>
    %337 = arith.addf %335, %336 : vector<12x12xf32>
    %c0_17 = arith.constant 0 : index
    %c0_18 = arith.constant 0 : index
    %c0_19 = arith.constant 0 : index
    %c0_20 = arith.constant 0 : index
    %338 = vector.load %arg4[%c0_17, %c0_18, %c0_19, %c0_20] : memref<1x1x12x12xf32, #tpu.memory_space<vmem>>, vector<1x1x12x12xf32>
    %339 = vector.shape_cast %338 : vector<1x1x12x12xf32> to vector<12x12xf32>
    %340 = vector.shape_cast %337 : vector<12x12xf32> to vector<1x1x12x12xf32>
    tpu.vector_store %arg4[%c0_17, %c0_18, %c0_19, %c0_20], %340 {strides = array<i32>} : memref<1x1x12x12xf32, #tpu.memory_space<vmem>>, vector<1x1x12x12xf32>,
    return
  }
  func.func @transform_0(%arg0: i32) -> i32 {
    %c0_i32 = arith.constant 0 : i32
    %c0_i32_0 = arith.constant 0 : i32
    return %c0_i32 : i32
  }
  func.func @transform_1(%arg0: i32) -> i32 {
    %c0_i32 = arith.constant 0 : i32
    %c0_i32_0 = arith.constant 0 : i32
    return %c0_i32 : i32
  }
  func.func @transform_2(%arg0: i32) -> (i32, i32, i32, i32) {
    %c0_i32 = arith.constant 0 : i32
    %c0_i32_0 = arith.constant 0 : i32
    %c0_i32_1 = arith.constant 0 : i32
    %c0_i32_2 = arith.constant 0 : i32
    return %arg0, %c0_i32, %c0_i32_0, %c0_i32_1 : i32, i32, i32, i32
  }
  func.func @transform_3(%arg0: i32) -> (i32, i32, i32, i32) {
    %c0_i32 = arith.constant 0 : i32
    %c0_i32_0 = arith.constant 0 : i32
    %c0_i32_1 = arith.constant 0 : i32
    %c0_i32_2 = arith.constant 0 : i32
    return %arg0, %c0_i32, %c0_i32_0, %c0_i32_1 : i32, i32, i32, i32
  }
}

</mosaic_0001>

<llo_original>
// kernel: tpu_custom_call.1
$region0: #{tpu_custom_call.1}
  #allocation0 [shape = 'u32[]', space=smem, size = 0x4, offset = 0x4, fixed_abs, tag = 'smem constant byte address 0x4 - core index']
  #allocation1 [shape = 'u32[72,128]{1,0:T(1,128)}', space=vmem, size = 0x9000, scoped, tag = 'internal scratch']
  #allocation2 [shape = 'f32[1]{0:T(128)S(6)}', space=smem, size = 0x200, scoped, tag = 'scoped memory for tpu_custom_call.1']
  %s0 = inlined_call_operand.vmem [shape: f32[75], index: 0, kind: input, shape index: {}]
  %s1 = inlined_call_operand.<no memory space> [shape: f32[1], index: 1, kind: input, shape index: {}]
  %s2 = inlined_call_operand.hbm [shape: f32[2,3,16,16], index: 2, kind: input, shape index: {}]
  %s3 = inlined_call_operand.vmem [shape: f32[2,1,12,12], index: 3, kind: output, shape index: {}]
  %s4 = sld [smem:[#allocation0]]
  $region53: #{tpu_custom_call.1} parent=0
    _
  %s6 = ssub.s32 1, %s4
  %s7 = scalar_select 0, %s6, %s4
  %8 = sst [smem:[#allocation2]] %s1
  $region1: #{tpu_custom_call.1} parent=0
    #allocation3 [shape = 'u8[512]{0}', space=smem, size = 0x200, scoped, tag = 'input window, operand 0, single buffered']
    #allocation4 [shape = 's32[2]{0}', space=sflag, size = 0x8, scoped, tag = 'scoped memory for tpu_custom_call.1']
    #allocation5 [shape = 's32[2]{0}', space=sflag, size = 0x8, scoped, tag = 'scoped memory for tpu_custom_call.1']
    #allocation6 [shape = 'u8[49152]{0}', space=vmem, size = 0xc000, scoped, tag = 'input window, operand 2']
    %9 = vsyncpa [#allocation5], 0
    %10 = vsyncpa [#allocation4], 0
    %s11 = scalar_lea.sflag [#allocation4], 1
    %12 = vsyncpa %s11, 0
    loop: start=0, step=1, limit=4
    $region2: #{tpu_custom_call.1} parent=1 // loop_pre_header
      _
    $region3: #{tpu_custom_call.1} parent=1 // loop_header
      %s14 = sphi 0, %s18
      %p15 = scmp.ge.s32.totalorder %s14, 4
      %s22 = sphi 0, %s22
      %s24 = sphi 0, %s22
      %s25 = sphi 0, %s24
      %s39 = sphi 0, %s25
      %s43 = sphi 0, %s43
      %s45 = sphi 0, %s43
      %s46 = sphi 0, %s45
      %s60 = sphi 0, %s46
      %s66 = sphi 0, %s68
      %s69 = sphi 0, %s66
      %s70 = sphi 0, %s69
      %s86 = sphi 0, %s70
      %s92 = sphi 0, %s94
      %s95 = sphi 0, %s92
      %s96 = sphi 0, %s95
      %s112 = sphi 0, %s96
    $region4: #{tpu_custom_call.1} parent=1 // loop_header_branch
      %17 = sbr.rel (%p15) target = $region8
    $region5: #{tpu_custom_call.1} parent=1 // loop_body
      %s19 = ssub.s32 %s14, 1
      %s20 = ssub.s32 %s14, 2
      %s21 = sadd.s32 %s14, 1
      %s23 = sadd.s32 %s22, 1
      %p26 = scmp.eq.s32.totalorder %s14, 1
      %p27 = scmp.ne.s32.totalorder %s22, %s24
      %p28 = scmp.eq.s32.totalorder %s14, 0
      %p29 = por %p27, %p28
      %p30 = scmp.ne.s32.totalorder %s22, %s24
      %p31 = scmp.eq.s32.totalorder %s19, 1
      %p32 = por %p30, %p31
      %p33 = scmp.ne.s32.totalorder %s24, %s25
      %p34 = scmp.eq.s32.totalorder %s19, 0
      %p35 = por %p33, %p34
      %p36 = scmp.ne.s32.totalorder %s24, %s25
      %p37 = scmp.eq.s32.totalorder %s20, 1
      %p38 = por %p36, %p37
      %p40 = scmp.ne.s32.totalorder %s25, %s39
      %p41 = scmp.eq.s32.totalorder %s20, 0
      %p42 = por %p40, %p41
      %s44 = sadd.s32 %s43, 1
      %p47 = scmp.eq.s32.totalorder %s14, 1
      %p48 = scmp.ne.s32.totalorder %s43, %s45
      %p49 = scmp.eq.s32.totalorder %s14, 0
      %p50 = por %p48, %p49
      %p51 = scmp.ne.s32.totalorder %s43, %s45
      %p52 = scmp.eq.s32.totalorder %s19, 1
      %p53 = por %p51, %p52
      %p54 = scmp.ne.s32.totalorder %s45, %s46
      %p55 = scmp.eq.s32.totalorder %s19, 0
      %p56 = por %p54, %p55
      %p57 = scmp.ne.s32.totalorder %s45, %s46
      %p58 = scmp.eq.s32.totalorder %s20, 1
      %p59 = por %p57, %p58
      %p61 = scmp.ne.s32.totalorder %s46, %s60
      %p62 = scmp.eq.s32.totalorder %s20, 0
      %p63 = por %p61, %p62
      %s64 = ssub.s32 %s14, %s21
      %p65 = scmp.eq.s32.totalorder %s64, 0
      %s67 = sadd.s32 %s66, 1
      %s68 = scalar_select %p65, %s66, %s67
      %p71 = pneg %p65
      %p72 = scmp.eq.s32.totalorder %s14, 1
      %p73 = por %p71, %p72
      %p74 = scmp.ne.s32.totalorder %s66, %s69
      %p75 = scmp.eq.s32.totalorder %s14, 0
      %p76 = por %p74, %p75
      %p77 = scmp.ne.s32.totalorder %s66, %s69
      %p78 = scmp.eq.s32.totalorder %s19, 1
      %p79 = por %p77, %p78
      %p80 = scmp.ne.s32.totalorder %s69, %s70
      %p81 = scmp.eq.s32.totalorder %s19, 0
      %p82 = por %p80, %p81
      %p83 = scmp.ne.s32.totalorder %s69, %s70
      %p84 = scmp.eq.s32.totalorder %s20, 1
      %p85 = por %p83, %p84
      %p87 = scmp.ne.s32.totalorder %s70, %s86
      %p88 = scmp.eq.s32.totalorder %s20, 0
      %p89 = por %p87, %p88
      %s90 = ssub.s32 %s14, %s21
      %p91 = scmp.eq.s32.totalorder %s90, 0
      %s93 = sadd.s32 %s92, 1
      %s94 = scalar_select %p91, %s92, %s93
      %p97 = pneg %p91
      %p98 = scmp.eq.s32.totalorder %s14, 1
      %p99 = por %p97, %p98
      %p100 = scmp.ne.s32.totalorder %s92, %s95
      %p101 = scmp.eq.s32.totalorder %s14, 0
      %p102 = por %p100, %p101
      %p103 = scmp.ne.s32.totalorder %s92, %s95
      %p104 = scmp.eq.s32.totalorder %s19, 1
      %p105 = por %p103, %p104
      %p106 = scmp.ne.s32.totalorder %s95, %s96
      %p107 = scmp.eq.s32.totalorder %s19, 0
      %p108 = por %p106, %p107
      %p109 = scmp.ne.s32.totalorder %s95, %s96
      %p110 = scmp.eq.s32.totalorder %s20, 1
      %p111 = por %p109, %p110
      %p113 = scmp.ne.s32.totalorder %s96, %s112
      %p114 = scmp.eq.s32.totalorder %s20, 0
      %p115 = por %p113, %p114
      %p116 = scmp.le.s32.totalorder 1, %s14
      %p117 = scmp.lt.s32.totalorder %s14, 3
      %p118 = pnand %p116, %p117
      %p119 = pneg %p118
      // Predicated region
      $region9: #{tpu_custom_call.1} parent=5 // pred_check
        _
      $region10: #{tpu_custom_call.1} parent=5 // pred_check_branch
        %121 = sbr.rel (%p118) target = $region12
      $region11: #{tpu_custom_call.1} parent=5 // pred_region
        %s122 = ssub.s32 %s14, 1
        // Predicated region
        $region13: #{tpu_custom_call.1} parent=11 // pred_check
          %p123 = pneg %p35
        $region14: #{tpu_custom_call.1} parent=11 // pred_check_branch
          %125 = sbr.rel (%p123) target = $region16
        $region15: #{tpu_custom_call.1} parent=11 // pred_region
          %127 = vsyncadd [#allocation5], 0
          %s129 = sshll.u32 %s0, 4
          %s130 = int_to_ptr.vmem [resolvable:$true] %s129
          %132 = dma.vmem_to_smem %s130, 16, [#allocation3], [#allocation5]
        $region16: #{tpu_custom_call.1} parent=11 // pred_fallthru
          _
        // Predicated region
        $region17: #{tpu_custom_call.1} parent=11 // pred_check
          %p133 = pneg %p56
        $region18: #{tpu_custom_call.1} parent=11 // pred_check_branch
          %135 = sbr.rel (%p133) target = $region20
        $region19: #{tpu_custom_call.1} parent=11 // pred_region
          _
        $region20: #{tpu_custom_call.1} parent=11 // pred_fallthru
          _
      $region12: #{tpu_custom_call.1} parent=5 // pred_fallthru
        _
      %p136 = scmp.lt.s32.totalorder %s14, 2
      // Predicated region
      $region21: #{tpu_custom_call.1} parent=5 // pred_check
        %p137 = pneg %p136
      $region22: #{tpu_custom_call.1} parent=5 // pred_check_branch
        %139 = sbr.rel (%p137) target = $region24
      $region23: #{tpu_custom_call.1} parent=5 // pred_region
        // Predicated region
        $region25: #{tpu_custom_call.1} parent=23 // pred_check
          %p140 = pneg %p76
        $region26: #{tpu_custom_call.1} parent=23 // pred_check_branch
          %142 = sbr.rel (%p140) target = $region28
        $region27: #{tpu_custom_call.1} parent=23 // pred_region
          %s143 = sand.u32 %s66, 1
          %s144 = scalar_lea.sflag [#allocation4], %s143
          %s145 = sand.u32 %s66, 1
          %s146 = smul.addr %s145, 48
          %s147 = scalar_lea.vmem [#allocation6], %s146
          %149 = vsyncadd %s144, 0
          %s150 = smul.addr %s14, 6
          %s151 = smul.addr %s150, 8
          %s152 = scalar_lea.hbm %s2, %s151
          %s153 = sshll.u32 %s152, 4
          %s154 = int_to_ptr.hbm [resolvable:$true] %s153
          %s155 = sshll.u32 %s147, 4
          %s156 = int_to_ptr.vmem [resolvable:$true] %s155
          %161 = dma.hbm_to_vmem [thread:$0]  %s154, 768, %s156, %s144, 128, 128, 8
        $region28: #{tpu_custom_call.1} parent=23 // pred_fallthru
          _
      $region24: #{tpu_custom_call.1} parent=5 // pred_fallthru
        _
      %p162 = scmp.le.s32.totalorder 1, %s14
      %p163 = scmp.lt.s32.totalorder %s14, 3
      %p164 = pnand %p162, %p163
      %p165 = pneg %p164
      // Predicated region
      $region29: #{tpu_custom_call.1} parent=5 // pred_check
        _
      $region30: #{tpu_custom_call.1} parent=5 // pred_check_branch
        %167 = sbr.rel (%p164) target = $region32
      $region31: #{tpu_custom_call.1} parent=5 // pred_region
        %s168 = ssub.s32 %s14, 1
        // Predicated region
        $region33: #{tpu_custom_call.1} parent=31 // pred_check
          %p169 = pneg %p35
        $region34: #{tpu_custom_call.1} parent=31 // pred_check_branch
          %171 = sbr.rel (%p169) target = $region36
        $region35: #{tpu_custom_call.1} parent=31 // pred_region
          %173 = dma.done [#allocation5], 16
        $region36: #{tpu_custom_call.1} parent=31 // pred_fallthru
          _
        %s174 = sand.u32 %s69, 1
        %s175 = scalar_lea.sflag [#allocation4], %s174
        %s176 = sand.u32 %s69, 1
        %s177 = smul.addr %s176, 48
        %s178 = scalar_lea.vmem [#allocation6], %s177
        // Predicated region
        $region37: #{tpu_custom_call.1} parent=31 // pred_check
          %p179 = pneg %p82
        $region38: #{tpu_custom_call.1} parent=31 // pred_check_branch
          %181 = sbr.rel (%p179) target = $region40
        $region39: #{tpu_custom_call.1} parent=31 // pred_region
          %183 = dma.done %s175, 768
        $region40: #{tpu_custom_call.1} parent=31 // pred_fallthru
          _
        %184 = sfence
        %p185 = pneg %p35
        %p186 = pneg %p32
        %p187 = pneg %p56
        %p188 = pneg %p53
        %s189 = sand.u32 %s69, 1
        %s190 = scalar_lea.sflag [#allocation4], %s189
        %s191 = sand.u32 %s69, 1
        %s192 = smul.addr %s191, 48
        %s193 = scalar_lea.vmem [#allocation6], %s192
        %p194 = pneg %p82
        %p195 = pneg %p79
        %p196 = pneg %p108
        %p197 = pneg %p105
        %p198 = scmp.lt.s32.totalorder %s19, 1
        %s199 = scalar_select %p198, %s19, 1
        %s200 = smul.addr %s199, 2
        %s201 = smul.addr %s200, 8
        %s202 = scalar_lea.vmem %s3, %s201
        %p203 = scmp.lt.s32.totalorder %s19, 1
        %s204 = scalar_select %p203, %s19, 1
        %s205 = smul.addr %s204, 2
        %s206 = smul.addr %s205, 8
        %s207 = scalar_lea.vmem %s3, %s206
        %v208 = vld [vmem:[%s178] sm:$0xff]
        %v209 = vld [vmem:[%s178 + $0x8] sm:$0xff]
        %s210 = sld [smem:[#allocation3]]
        %v211 = vstv %s210
        %v212 = vmul.f32 %v211, %v208
        %v213 = vmul.f32 %v211, %v209
        %v214 = vadd.f32 %v212, 0.0
        %v215 = vadd.f32 %v213, 0.0
        %s216 = sld [smem:[#allocation3 + $0x1]]
        %v217 = vstv %s216
        %v218 = vmul.f32 %v217, %v208
        %v219 = vmul.f32 %v217, %v209
        %v220 = vadd.f32 %v218, 0.0
        %v221 = vadd.f32 %v219, 0.0
        %s222 = sld [smem:[#allocation3 + $0x2]]
        %v223 = vstv %s222
        %v224 = vmul.f32 %v223, %v208
        %v225 = vmul.f32 %v223, %v209
        %v226 = vadd.f32 %v224, 0.0
        %v227 = vadd.f32 %v225, 0.0
        %s228 = sld [smem:[#allocation3 + $0x3]]
        %v229 = vstv %s228
        %v230 = vmul.f32 %v229, %v208
        %v231 = vmul.f32 %v229, %v209
        %v232 = vadd.f32 %v230, 0.0
        %v233 = vadd.f32 %v231, 0.0
        %s234 = sld [smem:[#allocation3 + $0x4]]
        %v235 = vstv %s234
        %v236 = vmul.f32 %v235, %v208
        %v237 = vmul.f32 %v235, %v209
        %v238 = vadd.f32 %v236, 0.0
        %v239 = vadd.f32 %v237, 0.0
        %s240 = sld [smem:[#allocation3 + $0x5]]
        %v241 = vstv %s240
        %v242 = vmul.f32 %v241, %v208
        %v243 = vmul.f32 %v241, %v209
        %vm246 = vcmask 1046528
        %v247 = vrot.slane %v242, 1
        %v248 = vrot.slane %v243, 1
        %v249 = vsel %vm246, %v247, %v248
        %v252 = vadd.f32 %v214, %v249
        %v253 = vadd.f32 %v215, %v248
        %s254 = sld [smem:[#allocation3 + $0x6]]
        %v255 = vstv %s254
        %v256 = vmul.f32 %v255, %v208
        %v257 = vmul.f32 %v255, %v209
        %v260 = vrot.slane %v256, 1
        %v261 = vrot.slane %v257, 1
        %v262 = vsel %vm246, %v260, %v261
        %v265 = vadd.f32 %v220, %v262
        %v266 = vadd.f32 %v221, %v261
        %s267 = sld [smem:[#allocation3 + $0x7]]
        %v268 = vstv %s267
        %v269 = vmul.f32 %v268, %v208
        %v270 = vmul.f32 %v268, %v209
        %v273 = vrot.slane %v269, 1
        %v274 = vrot.slane %v270, 1
        %v275 = vsel %vm246, %v273, %v274
        %v278 = vadd.f32 %v226, %v275
        %v279 = vadd.f32 %v227, %v274
        %s280 = sld [smem:[#allocation3 + $0x8]]
        %v281 = vstv %s280
        %v282 = vmul.f32 %v281, %v208
        %v283 = vmul.f32 %v281, %v209
        %v286 = vrot.slane %v282, 1
        %v287 = vrot.slane %v283, 1
        %v288 = vsel %vm246, %v286, %v287
        %v291 = vadd.f32 %v232, %v288
        %v292 = vadd.f32 %v233, %v287
        %s293 = sld [smem:[#allocation3 + $0x9]]
        %v294 = vstv %s293
        %v295 = vmul.f32 %v294, %v208
        %v296 = vmul.f32 %v294, %v209
        %v299 = vrot.slane %v295, 1
        %v300 = vrot.slane %v296, 1
        %v301 = vsel %vm246, %v299, %v300
        %v304 = vadd.f32 %v238, %v301
        %v305 = vadd.f32 %v239, %v300
        %s306 = sld [smem:[#allocation3 + $0xa]]
        %v307 = vstv %s306
        %v308 = vmul.f32 %v307, %v208
        %v309 = vmul.f32 %v307, %v209
        %vm312 = vcmask 1045504
        %v313 = vrot.slane %v308, 2
        %v314 = vrot.slane %v309, 2
        %v315 = vsel %vm312, %v313, %v314
        %v318 = vadd.f32 %v252, %v315
        %v319 = vadd.f32 %v253, %v314
        %s320 = sld [smem:[#allocation3 + $0xb]]
        %v321 = vstv %s320
        %v322 = vmul.f32 %v321, %v208
        %v323 = vmul.f32 %v321, %v209
        %v326 = vrot.slane %v322, 2
        %v327 = vrot.slane %v323, 2
        %v328 = vsel %vm312, %v326, %v327
        %v331 = vadd.f32 %v265, %v328
        %v332 = vadd.f32 %v266, %v327
        %s333 = sld [smem:[#allocation3 + $0xc]]
        %v334 = vstv %s333
        %v335 = vmul.f32 %v334, %v208
        %v336 = vmul.f32 %v334, %v209
        %v339 = vrot.slane %v335, 2
        %v340 = vrot.slane %v336, 2
        %v341 = vsel %vm312, %v339, %v340
        %v344 = vadd.f32 %v278, %v341
        %v345 = vadd.f32 %v279, %v340
        %s346 = sld [smem:[#allocation3 + $0xd]]
        %v347 = vstv %s346
        %v348 = vmul.f32 %v347, %v208
        %v349 = vmul.f32 %v347, %v209
        %v352 = vrot.slane %v348, 2
        %v353 = vrot.slane %v349, 2
        %v354 = vsel %vm312, %v352, %v353
        %v357 = vadd.f32 %v291, %v354
        %v358 = vadd.f32 %v292, %v353
        %s359 = sld [smem:[#allocation3 + $0xe]]
        %v360 = vstv %s359
        %v361 = vmul.f32 %v360, %v208
        %v362 = vmul.f32 %v360, %v209
        %v365 = vrot.slane %v361, 2
        %v366 = vrot.slane %v362, 2
        %v367 = vsel %vm312, %v365, %v366
        %v370 = vadd.f32 %v304, %v367
        %v371 = vadd.f32 %v305, %v366
        %s372 = sld [smem:[#allocation3 + $0xf]]
        %v373 = vstv %s372
        %v374 = vmul.f32 %v373, %v208
        %v375 = vmul.f32 %v373, %v209
        %vm378 = vcmask 1044480
        %v379 = vrot.slane %v374, 3
        %v380 = vrot.slane %v375, 3
        %v381 = vsel %vm378, %v379, %v380
        %v384 = vadd.f32 %v318, %v381
        %v385 = vadd.f32 %v319, %v380
        %s386 = sld [smem:[#allocation3 + $0x10]]
        %v387 = vstv %s386
        %v388 = vmul.f32 %v387, %v208
        %v389 = vmul.f32 %v387, %v209
        %v392 = vrot.slane %v388, 3
        %v393 = vrot.slane %v389, 3
        %v394 = vsel %vm378, %v392, %v393
        %v397 = vadd.f32 %v331, %v394
        %v398 = vadd.f32 %v332, %v393
        %s399 = sld [smem:[#allocation3 + $0x11]]
        %v400 = vstv %s399
        %v401 = vmul.f32 %v400, %v208
        %v402 = vmul.f32 %v400, %v209
        %v405 = vrot.slane %v401, 3
        %v406 = vrot.slane %v402, 3
        %v407 = vsel %vm378, %v405, %v406
        %v410 = vadd.f32 %v344, %v407
        %v411 = vadd.f32 %v345, %v406
        %s412 = sld [smem:[#allocation3 + $0x12]]
        %v413 = vstv %s412
        %v414 = vmul.f32 %v413, %v208
        %v415 = vmul.f32 %v413, %v209
        %v418 = vrot.slane %v414, 3
        %v419 = vrot.slane %v415, 3
        %v420 = vsel %vm378, %v418, %v419
        %v423 = vadd.f32 %v357, %v420
        %v424 = vadd.f32 %v358, %v419
        %s425 = sld [smem:[#allocation3 + $0x13]]
        %v426 = vstv %s425
        %v427 = vmul.f32 %v426, %v208
        %v428 = vmul.f32 %v426, %v209
        %v431 = vrot.slane %v427, 3
        %v432 = vrot.slane %v428, 3
        %v433 = vsel %vm378, %v431, %v432
        %v436 = vadd.f32 %v370, %v433
        %v437 = vadd.f32 %v371, %v432
        %s438 = sld [smem:[#allocation3 + $0x14]]
        %v439 = vstv %s438
        %v440 = vmul.f32 %v439, %v208
        %v441 = vmul.f32 %v439, %v209
        %vm444 = vcmask 1043456
        %v445 = vrot.slane %v440, 4
        %v446 = vrot.slane %v441, 4
        %v447 = vsel %vm444, %v445, %v446
        %v450 = vadd.f32 %v384, %v447
        %v451 = vadd.f32 %v385, %v446
        %s452 = sld [smem:[#allocation3 + $0x15]]
        %v453 = vstv %s452
        %v454 = vmul.f32 %v453, %v208
        %v455 = vmul.f32 %v453, %v209
        %v458 = vrot.slane %v454, 4
        %v459 = vrot.slane %v455, 4
        %v460 = vsel %vm444, %v458, %v459
        %v463 = vadd.f32 %v397, %v460
        %v464 = vadd.f32 %v398, %v459
        %s465 = sld [smem:[#allocation3 + $0x16]]
        %v466 = vstv %s465
        %v467 = vmul.f32 %v466, %v208
        %v468 = vmul.f32 %v466, %v209
        %v471 = vrot.slane %v467, 4
        %v472 = vrot.slane %v468, 4
        %v473 = vsel %vm444, %v471, %v472
        %v476 = vadd.f32 %v410, %v473
        %v477 = vadd.f32 %v411, %v472
        %s478 = sld [smem:[#allocation3 + $0x17]]
        %v479 = vstv %s478
        %v480 = vmul.f32 %v479, %v208
        %v481 = vmul.f32 %v479, %v209
        %v484 = vrot.slane %v480, 4
        %v485 = vrot.slane %v481, 4
        %v486 = vsel %vm444, %v484, %v485
        %v489 = vadd.f32 %v423, %v486
        %v490 = vadd.f32 %v424, %v485
        %s491 = sld [smem:[#allocation3 + $0x18]]
        %v492 = vstv %s491
        %v493 = vmul.f32 %v492, %v208
        %v494 = vmul.f32 %v492, %v209
        %v497 = vrot.slane %v493, 4
        %v498 = vrot.slane %v494, 4
        %v499 = vsel %vm444, %v497, %v498
        %v502 = vadd.f32 %v436, %v499
        %v503 = vadd.f32 %v437, %v498
        %s504 = scalar_lea.vmem %s178, 16 [#allocation6]
        %v505 = vld [vmem:[%s504] sm:$0xff]
        %v506 = vld [vmem:[%s504 + $0x8] sm:$0xff]
        %s507 = sld [smem:[#allocation3 + $0x19]]
        %v508 = vstv %s507
        %v509 = vmul.f32 %v508, %v505
        %v510 = vmul.f32 %v508, %v506
        %v511 = vadd.f32 %v450, %v509
        %v512 = vadd.f32 %v451, %v510
        %s513 = sld [smem:[#allocation3 + $0x1a]]
        %v514 = vstv %s513
        %v515 = vmul.f32 %v514, %v505
        %v516 = vmul.f32 %v514, %v506
        %v517 = vadd.f32 %v463, %v515
        %v518 = vadd.f32 %v464, %v516
        %s519 = sld [smem:[#allocation3 + $0x1b]]
        %v520 = vstv %s519
        %v521 = vmul.f32 %v520, %v505
        %v522 = vmul.f32 %v520, %v506
        %v523 = vadd.f32 %v476, %v521
        %v524 = vadd.f32 %v477, %v522
        %s525 = sld [smem:[#allocation3 + $0x1c]]
        %v526 = vstv %s525
        %v527 = vmul.f32 %v526, %v505
        %v528 = vmul.f32 %v526, %v506
        %v529 = vadd.f32 %v489, %v527
        %v530 = vadd.f32 %v490, %v528
        %s531 = sld [smem:[#allocation3 + $0x1d]]
        %v532 = vstv %s531
        %v533 = vmul.f32 %v532, %v505
        %v534 = vmul.f32 %v532, %v506
        %v535 = vadd.f32 %v502, %v533
        %v536 = vadd.f32 %v503, %v534
        %s537 = sld [smem:[#allocation3 + $0x1e]]
        %v538 = vstv %s537
        %v539 = vmul.f32 %v538, %v505
        %v540 = vmul.f32 %v538, %v506
        %v543 = vrot.slane %v539, 1
        %v544 = vrot.slane %v540, 1
        %v545 = vsel %vm246, %v543, %v544
        %v548 = vadd.f32 %v511, %v545
        %v549 = vadd.f32 %v512, %v544
        %s550 = sld [smem:[#allocation3 + $0x1f]]
        %v551 = vstv %s550
        %v552 = vmul.f32 %v551, %v505
        %v553 = vmul.f32 %v551, %v506
        %v556 = vrot.slane %v552, 1
        %v557 = vrot.slane %v553, 1
        %v558 = vsel %vm246, %v556, %v557
        %v561 = vadd.f32 %v517, %v558
        %v562 = vadd.f32 %v518, %v557
        %s563 = sld [smem:[#allocation3 + $0x20]]
        %v564 = vstv %s563
        %v565 = vmul.f32 %v564, %v505
        %v566 = vmul.f32 %v564, %v506
        %v569 = vrot.slane %v565, 1
        %v570 = vrot.slane %v566, 1
        %v571 = vsel %vm246, %v569, %v570
        %v574 = vadd.f32 %v523, %v571
        %v575 = vadd.f32 %v524, %v570
        %s576 = sld [smem:[#allocation3 + $0x21]]
        %v577 = vstv %s576
        %v578 = vmul.f32 %v577, %v505
        %v579 = vmul.f32 %v577, %v506
        %v582 = vrot.slane %v578, 1
        %v583 = vrot.slane %v579, 1
        %v584 = vsel %vm246, %v582, %v583
        %v587 = vadd.f32 %v529, %v584
        %v588 = vadd.f32 %v530, %v583
        %s589 = sld [smem:[#allocation3 + $0x22]]
        %v590 = vstv %s589
        %v591 = vmul.f32 %v590, %v505
        %v592 = vmul.f32 %v590, %v506
        %v595 = vrot.slane %v591, 1
        %v596 = vrot.slane %v592, 1
        %v597 = vsel %vm246, %v595, %v596
        %v600 = vadd.f32 %v535, %v597
        %v601 = vadd.f32 %v536, %v596
        %s602 = sld [smem:[#allocation3 + $0x23]]
        %v603 = vstv %s602
        %v604 = vmul.f32 %v603, %v505
        %v605 = vmul.f32 %v603, %v506
        %v608 = vrot.slane %v604, 2
        %v609 = vrot.slane %v605, 2
        %v610 = vsel %vm312, %v608, %v609
        %v613 = vadd.f32 %v548, %v610
        %v614 = vadd.f32 %v549, %v609
        %s615 = sld [smem:[#allocation3 + $0x24]]
        %v616 = vstv %s615
        %v617 = vmul.f32 %v616, %v505
        %v618 = vmul.f32 %v616, %v506
        %v621 = vrot.slane %v617, 2
        %v622 = vrot.slane %v618, 2
        %v623 = vsel %vm312, %v621, %v622
        %v626 = vadd.f32 %v561, %v623
        %v627 = vadd.f32 %v562, %v622
        %s628 = sld [smem:[#allocation3 + $0x25]]
        %v629 = vstv %s628
        %v630 = vmul.f32 %v629, %v505
        %v631 = vmul.f32 %v629, %v506
        %v634 = vrot.slane %v630, 2
        %v635 = vrot.slane %v631, 2
        %v636 = vsel %vm312, %v634, %v635
        %v639 = vadd.f32 %v574, %v636
        %v640 = vadd.f32 %v575, %v635
        %s641 = sld [smem:[#allocation3 + $0x26]]
        %v642 = vstv %s641
        %v643 = vmul.f32 %v642, %v505
        %v644 = vmul.f32 %v642, %v506
        %v647 = vrot.slane %v643, 2
        %v648 = vrot.slane %v644, 2
        %v649 = vsel %vm312, %v647, %v648
        %v652 = vadd.f32 %v587, %v649
        %v653 = vadd.f32 %v588, %v648
        %s654 = sld [smem:[#allocation3 + $0x27]]
        %v655 = vstv %s654
        %v656 = vmul.f32 %v655, %v505
        %v657 = vmul.f32 %v655, %v506
        %v660 = vrot.slane %v656, 2
        %v661 = vrot.slane %v657, 2
        %v662 = vsel %vm312, %v660, %v661
        %v665 = vadd.f32 %v600, %v662
        %v666 = vadd.f32 %v601, %v661
        %s667 = sld [smem:[#allocation3 + $0x28]]
        %v668 = vstv %s667
        %v669 = vmul.f32 %v668, %v505
        %v670 = vmul.f32 %v668, %v506
        %v673 = vrot.slane %v669, 3
        %v674 = vrot.slane %v670, 3
        %v675 = vsel %vm378, %v673, %v674
        %v678 = vadd.f32 %v613, %v675
        %v679 = vadd.f32 %v614, %v674
        %s680 = sld [smem:[#allocation3 + $0x29]]
        %v681 = vstv %s680
        %v682 = vmul.f32 %v681, %v505
        %v683 = vmul.f32 %v681, %v506
        %v686 = vrot.slane %v682, 3
        %v687 = vrot.slane %v683, 3
        %v688 = vsel %vm378, %v686, %v687
        %v691 = vadd.f32 %v626, %v688
        %v692 = vadd.f32 %v627, %v687
        %s693 = sld [smem:[#allocation3 + $0x2a]]
        %v694 = vstv %s693
        %v695 = vmul.f32 %v694, %v505
        %v696 = vmul.f32 %v694, %v506
        %v699 = vrot.slane %v695, 3
        %v700 = vrot.slane %v696, 3
        %v701 = vsel %vm378, %v699, %v700
        %v704 = vadd.f32 %v639, %v701
        %v705 = vadd.f32 %v640, %v700
        %s706 = sld [smem:[#allocation3 + $0x2b]]
        %v707 = vstv %s706
        %v708 = vmul.f32 %v707, %v505
        %v709 = vmul.f32 %v707, %v506
        %v712 = vrot.slane %v708, 3
        %v713 = vrot.slane %v709, 3
        %v714 = vsel %vm378, %v712, %v713
        %v717 = vadd.f32 %v652, %v714
        %v718 = vadd.f32 %v653, %v713
        %s719 = sld [smem:[#allocation3 + $0x2c]]
        %v720 = vstv %s719
        %v721 = vmul.f32 %v720, %v505
        %v722 = vmul.f32 %v720, %v506
        %v725 = vrot.slane %v721, 3
        %v726 = vrot.slane %v722, 3
        %v727 = vsel %vm378, %v725, %v726
        %v730 = vadd.f32 %v665, %v727
        %v731 = vadd.f32 %v666, %v726
        %s732 = sld [smem:[#allocation3 + $0x2d]]
        %v733 = vstv %s732
        %v734 = vmul.f32 %v733, %v505
        %v735 = vmul.f32 %v733, %v506
        %v738 = vrot.slane %v734, 4
        %v739 = vrot.slane %v735, 4
        %v740 = vsel %vm444, %v738, %v739
        %v743 = vadd.f32 %v678, %v740
        %v744 = vadd.f32 %v679, %v739
        %s745 = sld [smem:[#allocation3 + $0x2e]]
        %v746 = vstv %s745
        %v747 = vmul.f32 %v746, %v505
        %v748 = vmul.f32 %v746, %v506
        %v751 = vrot.slane %v747, 4
        %v752 = vrot.slane %v748, 4
        %v753 = vsel %vm444, %v751, %v752
        %v756 = vadd.f32 %v691, %v753
        %v757 = vadd.f32 %v692, %v752
        %s758 = sld [smem:[#allocation3 + $0x2f]]
        %v759 = vstv %s758
        %v760 = vmul.f32 %v759, %v505
        %v761 = vmul.f32 %v759, %v506
        %v764 = vrot.slane %v760, 4
        %v765 = vrot.slane %v761, 4
        %v766 = vsel %vm444, %v764, %v765
        %v769 = vadd.f32 %v704, %v766
        %v770 = vadd.f32 %v705, %v765
        %s771 = sld [smem:[#allocation3 + $0x30]]
        %v772 = vstv %s771
        %v773 = vmul.f32 %v772, %v505
        %v774 = vmul.f32 %v772, %v506
        %v777 = vrot.slane %v773, 4
        %v778 = vrot.slane %v774, 4
        %v779 = vsel %vm444, %v777, %v778
        %v782 = vadd.f32 %v717, %v779
        %v783 = vadd.f32 %v718, %v778
        %s784 = sld [smem:[#allocation3 + $0x31]]
        %v785 = vstv %s784
        %v786 = vmul.f32 %v785, %v505
        %v787 = vmul.f32 %v785, %v506
        %v790 = vrot.slane %v786, 4
        %v791 = vrot.slane %v787, 4
        %v792 = vsel %vm444, %v790, %v791
        %v795 = vadd.f32 %v730, %v792
        %v796 = vadd.f32 %v731, %v791
        %s797 = scalar_lea.vmem %s178, 32 [#allocation6]
        %v798 = vld [vmem:[%s797] sm:$0xff]
        %v799 = vld [vmem:[%s797 + $0x8] sm:$0xff]
        %s800 = sld [smem:[#allocation3 + $0x32]]
        %v801 = vstv %s800
        %v802 = vmul.f32 %v801, %v798
        %v803 = vmul.f32 %v801, %v799
        %v804 = vadd.f32 %v743, %v802
        %v805 = vadd.f32 %v744, %v803
        %s806 = sld [smem:[#allocation3 + $0x33]]
        %v807 = vstv %s806
        %v808 = vmul.f32 %v807, %v798
        %v809 = vmul.f32 %v807, %v799
        %v810 = vadd.f32 %v756, %v808
        %v811 = vadd.f32 %v757, %v809
        %s812 = sld [smem:[#allocation3 + $0x34]]
        %v813 = vstv %s812
        %v814 = vmul.f32 %v813, %v798
        %v815 = vmul.f32 %v813, %v799
        %v816 = vadd.f32 %v769, %v814
        %v817 = vadd.f32 %v770, %v815
        %s818 = sld [smem:[#allocation3 + $0x35]]
        %v819 = vstv %s818
        %v820 = vmul.f32 %v819, %v798
        %v821 = vmul.f32 %v819, %v799
        %v822 = vadd.f32 %v782, %v820
        %v823 = vadd.f32 %v783, %v821
        %s824 = sld [smem:[#allocation3 + $0x36]]
        %v825 = vstv %s824
        %v826 = vmul.f32 %v825, %v798
        %v827 = vmul.f32 %v825, %v799
        %v828 = vadd.f32 %v795, %v826
        %v829 = vadd.f32 %v796, %v827
        %s830 = sld [smem:[#allocation3 + $0x37]]
        %v831 = vstv %s830
        %v832 = vmul.f32 %v831, %v798
        %v833 = vmul.f32 %v831, %v799
        %v836 = vrot.slane %v832, 1
        %v837 = vrot.slane %v833, 1
        %v838 = vsel %vm246, %v836, %v837
        %v841 = vadd.f32 %v804, %v838
        %v842 = vadd.f32 %v805, %v837
        %s843 = sld [smem:[#allocation3 + $0x38]]
        %v844 = vstv %s843
        %v845 = vmul.f32 %v844, %v798
        %v846 = vmul.f32 %v844, %v799
        %v849 = vrot.slane %v845, 1
        %v850 = vrot.slane %v846, 1
        %v851 = vsel %vm246, %v849, %v850
        %v854 = vadd.f32 %v810, %v851
        %v855 = vadd.f32 %v811, %v850
        %s856 = sld [smem:[#allocation3 + $0x39]]
        %v857 = vstv %s856
        %v858 = vmul.f32 %v857, %v798
        %v859 = vmul.f32 %v857, %v799
        %v862 = vrot.slane %v858, 1
        %v863 = vrot.slane %v859, 1
        %v864 = vsel %vm246, %v862, %v863
        %v867 = vadd.f32 %v816, %v864
        %v868 = vadd.f32 %v817, %v863
        %s869 = sld [smem:[#allocation3 + $0x3a]]
        %v870 = vstv %s869
        %v871 = vmul.f32 %v870, %v798
        %v872 = vmul.f32 %v870, %v799
        %v875 = vrot.slane %v871, 1
        %v876 = vrot.slane %v872, 1
        %v877 = vsel %vm246, %v875, %v876
        %v880 = vadd.f32 %v822, %v877
        %v881 = vadd.f32 %v823, %v876
        %s882 = sld [smem:[#allocation3 + $0x3b]]
        %v883 = vstv %s882
        %v884 = vmul.f32 %v883, %v798
        %v885 = vmul.f32 %v883, %v799
        %v888 = vrot.slane %v884, 1
        %v889 = vrot.slane %v885, 1
        %v890 = vsel %vm246, %v888, %v889
        %v893 = vadd.f32 %v828, %v890
        %v894 = vadd.f32 %v829, %v889
        %s895 = sld [smem:[#allocation3 + $0x3c]]
        %v896 = vstv %s895
        %v897 = vmul.f32 %v896, %v798
        %v898 = vmul.f32 %v896, %v799
        %v901 = vrot.slane %v897, 2
        %v902 = vrot.slane %v898, 2
        %v903 = vsel %vm312, %v901, %v902
        %v906 = vadd.f32 %v841, %v903
        %v907 = vadd.f32 %v842, %v902
        %s908 = sld [smem:[#allocation3 + $0x3d]]
        %v909 = vstv %s908
        %v910 = vmul.f32 %v909, %v798
        %v911 = vmul.f32 %v909, %v799
        %v914 = vrot.slane %v910, 2
        %v915 = vrot.slane %v911, 2
        %v916 = vsel %vm312, %v914, %v915
        %v919 = vadd.f32 %v854, %v916
        %v920 = vadd.f32 %v855, %v915
        %s921 = sld [smem:[#allocation3 + $0x3e]]
        %v922 = vstv %s921
        %v923 = vmul.f32 %v922, %v798
        %v924 = vmul.f32 %v922, %v799
        %v927 = vrot.slane %v923, 2
        %v928 = vrot.slane %v924, 2
        %v929 = vsel %vm312, %v927, %v928
        %v932 = vadd.f32 %v867, %v929
        %v933 = vadd.f32 %v868, %v928
        %s934 = sld [smem:[#allocation3 + $0x3f]]
        %v935 = vstv %s934
        %v936 = vmul.f32 %v935, %v798
        %v937 = vmul.f32 %v935, %v799
        %v940 = vrot.slane %v936, 2
        %v941 = vrot.slane %v937, 2
        %v942 = vsel %vm312, %v940, %v941
        %v945 = vadd.f32 %v880, %v942
        %v946 = vadd.f32 %v881, %v941
        %s947 = sld [smem:[#allocation3 + $0x40]]
        %v948 = vstv %s947
        %v949 = vmul.f32 %v948, %v798
        %v950 = vmul.f32 %v948, %v799
        %v953 = vrot.slane %v949, 2
        %v954 = vrot.slane %v950, 2
        %v955 = vsel %vm312, %v953, %v954
        %v958 = vadd.f32 %v893, %v955
        %v959 = vadd.f32 %v894, %v954
        %s960 = sld [smem:[#allocation3 + $0x41]]
        %v961 = vstv %s960
        %v962 = vmul.f32 %v961, %v798
        %v963 = vmul.f32 %v961, %v799
        %v966 = vrot.slane %v962, 3
        %v967 = vrot.slane %v963, 3
        %v968 = vsel %vm378, %v966, %v967
        %v971 = vadd.f32 %v906, %v968
        %v972 = vadd.f32 %v907, %v967
        %s973 = sld [smem:[#allocation3 + $0x42]]
        %v974 = vstv %s973
        %v975 = vmul.f32 %v974, %v798
        %v976 = vmul.f32 %v974, %v799
        %v979 = vrot.slane %v975, 3
        %v980 = vrot.slane %v976, 3
        %v981 = vsel %vm378, %v979, %v980
        %v984 = vadd.f32 %v919, %v981
        %v985 = vadd.f32 %v920, %v980
        %s986 = sld [smem:[#allocation3 + $0x43]]
        %v987 = vstv %s986
        %v988 = vmul.f32 %v987, %v798
        %v989 = vmul.f32 %v987, %v799
        %v992 = vrot.slane %v988, 3
        %v993 = vrot.slane %v989, 3
        %v994 = vsel %vm378, %v992, %v993
        %v997 = vadd.f32 %v932, %v994
        %v998 = vadd.f32 %v933, %v993
        %s999 = sld [smem:[#allocation3 + $0x44]]
        %v1000 = vstv %s999
        %v1001 = vmul.f32 %v1000, %v798
        %v1002 = vmul.f32 %v1000, %v799
        %v1005 = vrot.slane %v1001, 3
        %v1006 = vrot.slane %v1002, 3
        %v1007 = vsel %vm378, %v1005, %v1006
        %v1010 = vadd.f32 %v945, %v1007
        %v1011 = vadd.f32 %v946, %v1006
        %s1012 = sld [smem:[#allocation3 + $0x45]]
        %v1013 = vstv %s1012
        %v1014 = vmul.f32 %v1013, %v798
        %v1015 = vmul.f32 %v1013, %v799
        %v1018 = vrot.slane %v1014, 3
        %v1019 = vrot.slane %v1015, 3
        %v1020 = vsel %vm378, %v1018, %v1019
        %v1023 = vadd.f32 %v958, %v1020
        %v1024 = vadd.f32 %v959, %v1019
        %s1025 = sld [smem:[#allocation3 + $0x46]]
        %v1026 = vstv %s1025
        %v1027 = vmul.f32 %v1026, %v798
        %v1028 = vmul.f32 %v1026, %v799
        %v1031 = vrot.slane %v1027, 4
        %v1032 = vrot.slane %v1028, 4
        %v1033 = vsel %vm444, %v1031, %v1032
        %v1036 = vadd.f32 %v971, %v1033
        %v1037 = vadd.f32 %v972, %v1032
        %s1038 = sld [smem:[#allocation3 + $0x47]]
        %v1039 = vstv %s1038
        %v1040 = vmul.f32 %v1039, %v798
        %v1041 = vmul.f32 %v1039, %v799
        %v1044 = vrot.slane %v1040, 4
        %v1045 = vrot.slane %v1041, 4
        %v1046 = vsel %vm444, %v1044, %v1045
        %v1049 = vadd.f32 %v984, %v1046
        %v1050 = vadd.f32 %v985, %v1045
        %s1051 = sld [smem:[#allocation3 + $0x48]]
        %v1052 = vstv %s1051
        %v1053 = vmul.f32 %v1052, %v798
        %v1054 = vmul.f32 %v1052, %v799
        %v1057 = vrot.slane %v1053, 4
        %v1058 = vrot.slane %v1054, 4
        %v1059 = vsel %vm444, %v1057, %v1058
        %v1062 = vadd.f32 %v997, %v1059
        %v1063 = vadd.f32 %v998, %v1058
        %s1064 = sld [smem:[#allocation3 + $0x49]]
        %v1065 = vstv %s1064
        %v1066 = vmul.f32 %v1065, %v798
        %v1067 = vmul.f32 %v1065, %v799
        %v1070 = vrot.slane %v1066, 4
        %v1071 = vrot.slane %v1067, 4
        %v1072 = vsel %vm444, %v1070, %v1071
        %v1075 = vadd.f32 %v1010, %v1072
        %v1076 = vadd.f32 %v1011, %v1071
        %s1077 = sld [smem:[#allocation3 + $0x4a]]
        %v1078 = vstv %s1077
        %v1079 = vmul.f32 %v1078, %v798
        %v1080 = vmul.f32 %v1078, %v799
        %v1083 = vrot.slane %v1079, 4
        %v1084 = vrot.slane %v1080, 4
        %v1085 = vsel %vm444, %v1083, %v1084
        %v1088 = vadd.f32 %v1023, %v1085
        %v1089 = vadd.f32 %v1024, %v1084
        %s1090 = sld [smem:[#allocation2]]
        %v1091 = vstv %s1090
        %v1092 = vadd.f32 %v1091, %v1036
        %v1093 = vadd.f32 %v1091, %v1037
        %1096 = vrot.lane.b32.xlu0 %v1049, 127
        %v1097 = vpop.permute.xlu0 %1096
        %1098 = vrot.lane.b32.xlu0 %v1050, 127
        %v1099 = vpop.permute.xlu0 %1098
        %v1102 = vadd.f32 %v1092, %v1097
        %v1103 = vadd.f32 %v1093, %v1099
        %1106 = vrot.lane.b32.xlu0 %v1062, 126
        %v1107 = vpop.permute.xlu0 %1106
        %1108 = vrot.lane.b32.xlu0 %v1063, 126
        %v1109 = vpop.permute.xlu0 %1108
        %v1112 = vadd.f32 %v1102, %v1107
        %v1113 = vadd.f32 %v1103, %v1109
        %1116 = vrot.lane.b32.xlu0 %v1075, 125
        %v1117 = vpop.permute.xlu0 %1116
        %1118 = vrot.lane.b32.xlu0 %v1076, 125
        %v1119 = vpop.permute.xlu0 %1118
        %v1122 = vadd.f32 %v1112, %v1117
        %v1123 = vadd.f32 %v1113, %v1119
        %1126 = vrot.lane.b32.xlu0 %v1088, 124
        %v1127 = vpop.permute.xlu0 %1126
        %1128 = vrot.lane.b32.xlu0 %v1089, 124
        %v1129 = vpop.permute.xlu0 %1128
        %v1132 = vadd.f32 %v1122, %v1127
        %v1133 = vadd.f32 %v1123, %v1129
        %vm1134 = vcmask 97280
        %1135 = vst.msk [vmem:[%s207] sm:$0xff] %vm1134, %v1132
        %vm1136 = vcmask 93184
        %1137 = vst.msk [vmem:[%s207 + $0x8] sm:$0xf] %vm1136, %v1133
        %p1138 = scmp.lt.s32.totalorder %s19, 1
        %s1139 = scalar_select %p1138, %s19, 1
        %s1140 = smul.addr %s1139, 2
        %s1141 = smul.addr %s1140, 8
        %s1142 = scalar_lea.vmem %s3, %s1141
        // Predicated region
        $region41: #{tpu_custom_call.1} parent=31 // pred_check
          %p1143 = pneg %p105
        $region42: #{tpu_custom_call.1} parent=31 // pred_check_branch
          %1145 = sbr.rel (%p1143) target = $region44
        $region43: #{tpu_custom_call.1} parent=31 // pred_region
          _
        $region44: #{tpu_custom_call.1} parent=31 // pred_fallthru
          _
      $region32: #{tpu_custom_call.1} parent=5 // pred_fallthru
        _
      %p1146 = scmp.le.s32.totalorder 2, %s14
      // Predicated region
      $region45: #{tpu_custom_call.1} parent=5 // pred_check
        %p1147 = pneg %p1146
      $region46: #{tpu_custom_call.1} parent=5 // pred_check_branch
        %1149 = sbr.rel (%p1147) target = $region48
      $region47: #{tpu_custom_call.1} parent=5 // pred_region
        %s1150 = ssub.s32 %s14, 2
        // Predicated region
        $region49: #{tpu_custom_call.1} parent=47 // pred_check
          %p1151 = pneg %p111
        $region50: #{tpu_custom_call.1} parent=47 // pred_check_branch
          %1153 = sbr.rel (%p1151) target = $region52
        $region51: #{tpu_custom_call.1} parent=47 // pred_region
          %p1154 = scmp.lt.s32.totalorder %s20, 1
          %s1155 = scalar_select %p1154, %s20, 1
          %s1156 = smul.addr %s1155, 2
          %s1157 = smul.addr %s1156, 8
          %s1158 = scalar_lea.vmem %s3, %s1157
        $region52: #{tpu_custom_call.1} parent=47 // pred_fallthru
          _
      $region48: #{tpu_custom_call.1} parent=5 // pred_fallthru
        _
    $region6: #{tpu_custom_call.1} parent=1 // loop_footer
      %s18 = sadd.s32 1, %s14
    $region7: #{tpu_custom_call.1} parent=1 // loop_footer_branch
      %13 = sbr.rel target = $region3
    $region8: #{tpu_custom_call.1} parent=1 // loop_exit
      _
    %1159 = vsyncpa [#allocation4], 1
    %s1160 = scalar_lea.sflag [#allocation4], 1
    %1161 = vsyncpa %s1160, 1
    %1162 = vsyncpa [#allocation5], 1
    %s1163 = scalar_lea.sflag [#allocation5], 1
    %1164 = vsyncpa %s1163, 1

</llo_original>
